<compile_context>
chip_gen: v7x
topology: tpu7x:2x2x1
jax: 0.10.0
libtpu: 0.0.40
codegen_flags: <defaults>
</compile_context>

<pallas_src>
import functools

import jax
import jax.numpy as jnp
from jax import lax
from jax.experimental import pallas as pl
from jax.experimental.pallas import tpu as pltpu


def _round_up(x, m):
    return ((x + m - 1) // m) * m


def _cdiv(a, b):
    return (a + b - 1) // b


_VMEM_BUDGET_BYTES = 48 * 1024 * 1024   # stays under v7x's 64 MiB physical VMEM


def _vmem_bytes_estimate(block_b, state_dim, hidden_dim, param_bytes):
    """Conservative per-step VMEM footprint estimate."""
    in_tile = 2 * block_b * _round_up(state_dim, 128) * 4   # dbl-buffered, lane-padded
    out_tile = 2 * 8 * block_b * 4                          # (1, block_b) row, sublane-padded
    acts = 3 * _round_up(hidden_dim, 8) * block_b * 4       # live / spilled f32 activations
    return in_tile + out_tile + acts + 2 * param_bytes


def _choose_block_b(B, state_dim, hidden_dim, param_bytes, block_b_max):
    """Pick the batch (lane) tile size and number of grid steps."""
    if B <= 128:
        return B, 1                      # single whole-array block
    # >= 2 steps so the "parallel" axis can feed both v7x TensorCores; picking
    # n_steps first keeps lane padding small (vs. rounding B up to one big block).
    n_steps = max(2, _cdiv(B, max(block_b_max, 128)))
    block_b = _round_up(_cdiv(B, n_steps), 128)
    # Respect the VMEM budget (matters only for very large hidden_dim).
    while block_b > 128 and _vmem_bytes_estimate(
            block_b, state_dim, hidden_dim, param_bytes) > _VMEM_BUDGET_BYTES:
        block_b = max(128, _round_up(block_b // 2, 128))
    return block_b, _cdiv(B, block_b)


def _value_net_kernel(x_ref, w1_ref, b1_ref, w2_ref, b2_ref,
                      w3_ref, b3_ref, w4_ref, b4_ref, o_ref, *, matmul_dtype):
    # x_ref: (block_b, state_dim) -- natural input layout, batch on sublanes.
    x = x_ref[...]

    # Layer 1: contract the feature axis against w1 (hidden, state_dim).
    # Result is (hidden, block_b): the batch moves onto the lane axis inside
    # the kernel (MXU/XLU transpose path) and stays there for layers 2-4.
    h = lax.dot_general(
        w1_ref[...].astype(matmul_dtype), x.astype(matmul_dtype),
        dimension_numbers=(((1,), (1,)), ((), ())),
        preferred_element_type=jnp.float32)
    h = jnp.maximum(h + b1_ref[...], 0.0)

    # Layers 2-3: (hidden, hidden) @ (hidden, block_b); bias/ReLU in f32 on VPU.
    h = jnp.dot(w2_ref[...].astype(matmul_dtype), h.astype(matmul_dtype),
                preferred_element_type=jnp.float32)
    h = jnp.maximum(h + b2_ref[...], 0.0)

    h = jnp.dot(w3_ref[...].astype(matmul_dtype), h.astype(matmul_dtype),
                preferred_element_type=jnp.float32)
    h = jnp.maximum(h + b3_ref[...], 0.0)

    # Layer 4 (out_dim == 1): VPU broadcast-multiply + sublane reduction
    # instead of pushing an M=1 matmul through the MXU.  w4 is (hidden, 1).
    out = jnp.sum(w4_ref[...] * h, axis=0, keepdims=True) + b4_ref[...]
    o_ref[...] = out.astype(o_ref.dtype)        # lane-dense (1, block_b) store


def _full_spec(arr):
    # Whole array, same block every step -> stays resident in VMEM.
    nd = arr.ndim
    return pl.BlockSpec(arr.shape, lambda i, _nd=nd: (0,) * _nd)


@functools.partial(jax.jit, static_argnames=("block_b_max", "matmul_dtype"))
def value_network_forward(state, params, block_b_max=4096,
                          matmul_dtype=jnp.float32):
    """state: (B, state_dim) f32 -> (B, 1) f32.

    params = (w1 (H,S), b1 (H,1), w2 (H,H), b2 (H,1), w3 (H,H), b3 (H,1),
              w4 (H,1), b4 (1,1)) -- see init_value_network_params.
    matmul_dtype=jnp.bfloat16 enables the bf16 MXU path (v6e/v7x lever for
    large hidden dims); the default keeps full f32 semantics.
    """
    w1, b1, w2, b2, w3, b3, w4, b4 = params
    B, state_dim = state.shape
    hidden_dim = w1.shape[0]

    param_bytes = sum(int(p.size) * p.dtype.itemsize for p in params)
    block_b, n_steps = _choose_block_b(B, state_dim, hidden_dim, param_bytes,
                                       block_b_max)

    vmem_est = _vmem_bytes_estimate(block_b, state_dim, hidden_dim, param_bytes)
    compiler_params = pltpu.CompilerParams(
        dimension_semantics=("parallel",),
        vmem_limit_bytes=(_VMEM_BUDGET_BYTES
                          if vmem_est > 24 * 1024 * 1024 else None),
    )

    kernel = functools.partial(_value_net_kernel, matmul_dtype=matmul_dtype)

    out_row = pl.pallas_call(
        kernel,
        out_shape=jax.ShapeDtypeStruct((1, B), jnp.float32),
        grid_spec=pltpu.PrefetchScalarGridSpec(
            num_scalar_prefetch=0,
            grid=(n_steps,),
            in_specs=[
                pl.BlockSpec((block_b, state_dim), lambda i: (i, 0)),  # state tile
                _full_spec(w1), _full_spec(b1),
                _full_spec(w2), _full_spec(b2),
                _full_spec(w3), _full_spec(b3),
                _full_spec(w4), _full_spec(b4),
            ],
            out_specs=pl.BlockSpec((1, block_b), lambda i: (0, i)),
        ),
        compiler_params=compiler_params,
    )(state, w1, b1, w2, b2, w3, b3, w4, b4)

    return out_row.reshape(B, 1)


def init_value_network_params(key, state_dim, hidden_dim, init_w=0.003):
    """PyTorch-style init.  Layers 1-3 keep the PyTorch (out, in) weight layout
    with (out, 1) bias columns (lane-broadcast inside the kernel); the final
    layer's weight is stored as a (hidden, 1) column (transposed)."""
    ks = jax.random.split(key, 8)

    def uniform(k, shape, bound):
        return jax.random.uniform(k, shape, jnp.float32, -bound, bound)

    b1_bound = 1.0 / (state_dim ** 0.5)
    bh_bound = 1.0 / (hidden_dim ** 0.5)
    w1 = uniform(ks[0], (hidden_dim, state_dim), b1_bound)
    b1 = uniform(ks[1], (hidden_dim, 1), b1_bound)
    w2 = uniform(ks[2], (hidden_dim, hidden_dim), bh_bound)
    b2 = uniform(ks[3], (hidden_dim, 1), bh_bound)
    w3 = uniform(ks[4], (hidden_dim, hidden_dim), bh_bound)
    b3 = uniform(ks[5], (hidden_dim, 1), bh_bound)
    w4 = uniform(ks[6], (hidden_dim, 1), init_w)    # stored transposed (column)
    b4 = uniform(ks[7], (1, 1), init_w)
    return (w1, b1, w2, b2, w3, b3, w4, b4)


def _reference_forward(state, params):
    w1, b1, w2, b2, w3, b3, w4, b4 = params
    h = jax.nn.relu(state @ w1.T + b1.T)
    h = jax.nn.relu(h @ w2.T + b2.T)
    h = jax.nn.relu(h @ w3.T + b3.T)
    return h @ w4 + b4


if __name__ == "__main__":
    key = jax.random.PRNGKey(0)
    k_params, k_state, k_state2 = jax.random.split(key, 3)

    batch, state_dim, hidden_dim = 8, 4, 32
    params = init_value_network_params(k_params, state_dim, hidden_dim)
    state = jax.random.normal(k_state, (batch, state_dim), dtype=jnp.float32)

    out = jax.block_until_ready(value_network_forward(state, params))
    ref = _reference_forward(state, params)
    assert out.shape == (batch, 1), out.shape
    assert jnp.allclose(out, ref, atol=1e-5, rtol=1e-5), "mismatch vs JAX reference"

    # Ragged batch > 128: exercises the multi-step grid + edge-block padding.
    batch2 = 200
    state2 = jax.random.normal(k_state2, (batch2, state_dim), dtype=jnp.float32)
    out2 = jax.block_until_ready(value_network_forward(state2, params))
    ref2 = _reference_forward(state2, params)
    assert out2.shape == (batch2, 1), out2.shape
    assert jnp.allclose(out2, ref2, atol=1e-5, rtol=1e-5), "mismatch (ragged batch)"

    print("KERNEL_OK")
</pallas_src>

<mosaic_0001>
module attributes {stable_mosaic.version = 11 : i64} {
  func.func @_value_net_kernel(%arg0: i32, %arg1: memref<8x4xf32, #tpu.memory_space<vmem>>, %arg2: memref<32x4xf32, #tpu.memory_space<vmem>>, %arg3: memref<32x1xf32, #tpu.memory_space<vmem>>, %arg4: memref<32x32xf32, #tpu.memory_space<vmem>>, %arg5: memref<32x1xf32, #tpu.memory_space<vmem>>, %arg6: memref<32x32xf32, #tpu.memory_space<vmem>>, %arg7: memref<32x1xf32, #tpu.memory_space<vmem>>, %arg8: memref<32x1xf32, #tpu.memory_space<vmem>>, %arg9: memref<1x1xf32, #tpu.memory_space<vmem>>, %arg10: memref<1x8xf32, #tpu.memory_space<vmem>>) attributes {dimension_semantics = [#tpu.dimension_semantics<parallel>], iteration_bounds = array<i64: 1>, scalar_prefetch = 0 : i64, scratch_operands = 0 : i64, tpu.core_type = #tpu.core_type<tc>, window_params = [{transform_indices = @transform_0, window_bounds = array<i64: 8, 4>}, {pipeline_mode = #tpu.pipeline_mode<synchronous>, transform_indices = @transform_1, window_bounds = array<i64: 32, 4>}, {pipeline_mode = #tpu.pipeline_mode<synchronous>, transform_indices = @transform_2, window_bounds = array<i64: 32, 1>}, {pipeline_mode = #tpu.pipeline_mode<synchronous>, transform_indices = @transform_3, window_bounds = array<i64: 32, 32>}, {pipeline_mode = #tpu.pipeline_mode<synchronous>, transform_indices = @transform_4, window_bounds = array<i64: 32, 1>}, {pipeline_mode = #tpu.pipeline_mode<synchronous>, transform_indices = @transform_5, window_bounds = array<i64: 32, 32>}, {pipeline_mode = #tpu.pipeline_mode<synchronous>, transform_indices = @transform_6, window_bounds = array<i64: 32, 1>}, {pipeline_mode = #tpu.pipeline_mode<synchronous>, transform_indices = @transform_7, window_bounds = array<i64: 32, 1>}, {pipeline_mode = #tpu.pipeline_mode<synchronous>, transform_indices = @transform_8, window_bounds = array<i64: 1, 1>}, {transform_indices = @transform_9, window_bounds = array<i64: 1, 8>}]} {
    %c0 = arith.constant 0 : index
    %c0_0 = arith.constant 0 : index
    %0 = vector.load %arg1[%c0, %c0_0] : memref<8x4xf32, #tpu.memory_space<vmem>>, vector<8x4xf32>
    %c0_1 = arith.constant 0 : index
    %c0_2 = arith.constant 0 : index
    %1 = vector.load %arg2[%c0_1, %c0_2] : memref<32x4xf32, #tpu.memory_space<vmem>>, vector<32x4xf32>
    %cst = arith.constant dense<0.000000e+00> : vector<32x8xf32>
    %2 = tpu.matmul %1, %0, %cst {dimension_numbers = #tpu.dot_dimension_numbers<[1], [1], [0], [0], [0, 0, 1, 0], [], []>} : vector<32x4xf32>, vector<8x4xf32>, vector<32x8xf32> -> vector<32x8xf32>
    %c0_3 = arith.constant 0 : index
    %c0_4 = arith.constant 0 : index
    %3 = vector.load %arg3[%c0_3, %c0_4] : memref<32x1xf32, #tpu.memory_space<vmem>>, vector<32x1xf32>
    %4 = vector.broadcast %3 : vector<32x1xf32> to vector<32x8xf32>
    %5 = arith.addf %2, %4 : vector<32x8xf32>
    %cst_5 = arith.constant 0.000000e+00 : f32
    %6 = vector.broadcast %cst_5 : f32 to vector<32x8xf32>
    %7 = arith.maximumf %5, %6 : vector<32x8xf32>
    %c0_6 = arith.constant 0 : index
    %c0_7 = arith.constant 0 : index
    %8 = vector.load %arg4[%c0_6, %c0_7] : memref<32x32xf32, #tpu.memory_space<vmem>>, vector<32x32xf32>
    %cst_8 = arith.constant dense<0.000000e+00> : vector<32x8xf32>
    %9 = tpu.matmul %8, %7, %cst_8 {dimension_numbers = #tpu.dot_dimension_numbers<[1], [0], [0], [1], [0, 0, 1, 1], [], []>} : vector<32x32xf32>, vector<32x8xf32>, vector<32x8xf32> -> vector<32x8xf32>
    %c0_9 = arith.constant 0 : index
    %c0_10 = arith.constant 0 : index
    %10 = vector.load %arg5[%c0_9, %c0_10] : memref<32x1xf32, #tpu.memory_space<vmem>>, vector<32x1xf32>
    %11 = vector.broadcast %10 : vector<32x1xf32> to vector<32x8xf32>
    %12 = arith.addf %9, %11 : vector<32x8xf32>
    %cst_11 = arith.constant 0.000000e+00 : f32
    %13 = vector.broadcast %cst_11 : f32 to vector<32x8xf32>
    %14 = arith.maximumf %12, %13 : vector<32x8xf32>
    %c0_12 = arith.constant 0 : index
    %c0_13 = arith.constant 0 : index
    %15 = vector.load %arg6[%c0_12, %c0_13] : memref<32x32xf32, #tpu.memory_space<vmem>>, vector<32x32xf32>
    %cst_14 = arith.constant dense<0.000000e+00> : vector<32x8xf32>
    %16 = tpu.matmul %15, %14, %cst_14 {dimension_numbers = #tpu.dot_dimension_numbers<[1], [0], [0], [1], [0, 0, 1, 1], [], []>} : vector<32x32xf32>, vector<32x8xf32>, vector<32x8xf32> -> vector<32x8xf32>
    %c0_15 = arith.constant 0 : index
    %c0_16 = arith.constant 0 : index
    %17 = vector.load %arg7[%c0_15, %c0_16] : memref<32x1xf32, #tpu.memory_space<vmem>>, vector<32x1xf32>
    %18 = vector.broadcast %17 : vector<32x1xf32> to vector<32x8xf32>
    %19 = arith.addf %16, %18 : vector<32x8xf32>
    %cst_17 = arith.constant 0.000000e+00 : f32
    %20 = vector.broadcast %cst_17 : f32 to vector<32x8xf32>
    %21 = arith.maximumf %19, %20 : vector<32x8xf32>
    %c0_18 = arith.constant 0 : index
    %c0_19 = arith.constant 0 : index
    %22 = vector.load %arg8[%c0_18, %c0_19] : memref<32x1xf32, #tpu.memory_space<vmem>>, vector<32x1xf32>
    %23 = vector.broadcast %22 : vector<32x1xf32> to vector<32x8xf32>
    %24 = arith.mulf %23, %21 : vector<32x8xf32>
    %cst_20 = arith.constant dense<0.000000e+00> : vector<8xf32>
    %25 = vector.multi_reduction <add>, %24, %cst_20 [0] : vector<32x8xf32> to vector<8xf32>
    %26 = vector.shape_cast %25 : vector<8xf32> to vector<1x8xf32>
    %c0_21 = arith.constant 0 : index
    %c0_22 = arith.constant 0 : index
    %27 = vector.load %arg9[%c0_21, %c0_22] : memref<1x1xf32, #tpu.memory_space<vmem>>, vector<1x1xf32>
    %28 = vector.broadcast %27 : vector<1x1xf32> to vector<1x8xf32>
    %29 = arith.addf %26, %28 : vector<1x8xf32>
    %c0_23 = arith.constant 0 : index
    %c0_24 = arith.constant 0 : index
    %30 = vector.load %arg10[%c0_23, %c0_24] : memref<1x8xf32, #tpu.memory_space<vmem>>, vector<1x8xf32>
    tpu.vector_store %arg10[%c0_23, %c0_24], %29 {strides = array<i32>} : memref<1x8xf32, #tpu.memory_space<vmem>>, vector<1x8xf32>,
    return
  }
  func.func @transform_0(%arg0: i32) -> (i32, i32) {
    %c0_i32 = arith.constant 0 : i32
    %c0_i32_0 = arith.constant 0 : i32
    return %arg0, %c0_i32 : i32, i32
  }
  func.func @transform_1(%arg0: i32) -> (i32, i32) {
    %c0_i32 = arith.constant 0 : i32
    %c0_i32_0 = arith.constant 0 : i32
    %c0_i32_1 = arith.constant 0 : i32
    return %c0_i32, %c0_i32_0 : i32, i32
  }
  func.func @transform_2(%arg0: i32) -> (i32, i32) {
    %c0_i32 = arith.constant 0 : i32
    %c0_i32_0 = arith.constant 0 : i32
    %c0_i32_1 = arith.constant 0 : i32
    return %c0_i32, %c0_i32_0 : i32, i32
  }
  func.func @transform_3(%arg0: i32) -> (i32, i32) {
    %c0_i32 = arith.constant 0 : i32
    %c0_i32_0 = arith.constant 0 : i32
    %c0_i32_1 = arith.constant 0 : i32
    return %c0_i32, %c0_i32_0 : i32, i32
  }
  func.func @transform_4(%arg0: i32) -> (i32, i32) {
    %c0_i32 = arith.constant 0 : i32
    %c0_i32_0 = arith.constant 0 : i32
    %c0_i32_1 = arith.constant 0 : i32
    return %c0_i32, %c0_i32_0 : i32, i32
  }
  func.func @transform_5(%arg0: i32) -> (i32, i32) {
    %c0_i32 = arith.constant 0 : i32
    %c0_i32_0 = arith.constant 0 : i32
    %c0_i32_1 = arith.constant 0 : i32
    return %c0_i32, %c0_i32_0 : i32, i32
  }
  func.func @transform_6(%arg0: i32) -> (i32, i32) {
    %c0_i32 = arith.constant 0 : i32
    %c0_i32_0 = arith.constant 0 : i32
    %c0_i32_1 = arith.constant 0 : i32
    return %c0_i32, %c0_i32_0 : i32, i32
  }
  func.func @transform_7(%arg0: i32) -> (i32, i32) {
    %c0_i32 = arith.constant 0 : i32
    %c0_i32_0 = arith.constant 0 : i32
    %c0_i32_1 = arith.constant 0 : i32
    return %c0_i32, %c0_i32_0 : i32, i32
  }
  func.func @transform_8(%arg0: i32) -> (i32, i32) {
    %c0_i32 = arith.constant 0 : i32
    %c0_i32_0 = arith.constant 0 : i32
    %c0_i32_1 = arith.constant 0 : i32
    return %c0_i32, %c0_i32_0 : i32, i32
  }
  func.func @transform_9(%arg0: i32) -> (i32, i32) {
    %c0_i32 = arith.constant 0 : i32
    %c0_i32_0 = arith.constant 0 : i32
    return %c0_i32, %arg0 : i32, i32
  }
}

</mosaic_0001>

<llo_original>
// kernel: value_network_forward.1
$region0: #{value_network_forward.1}
  #allocation0 [shape = 'u32[]', space=smem, size = 0x4, offset = 0x4, fixed_abs, tag = 'smem constant byte address 0x4 - core index']
  #allocation1 [shape = 'u32[144,128]{1,0:T(1,128)}', space=vmem, size = 0x12000, scoped, tag = 'internal scratch']
  #allocation2 [shape = 'f32[1,1]{1,0:T(1,128)S(1)}', space=vmem, size = 0x200, scoped, tag = 'scoped memory for value_network_forward.1']
  %s0 = inlined_call_operand.vmem [shape: f32[8,4], index: 0, kind: input, shape index: {}]
  %s1 = inlined_call_operand.vmem [shape: f32[32,4], index: 1, kind: input, shape index: {}]
  %s2 = inlined_call_operand.vmem [shape: f32[32,1], index: 2, kind: input, shape index: {}]
  %s3 = inlined_call_operand.vmem [shape: f32[32,32], index: 3, kind: input, shape index: {}]
  %s4 = inlined_call_operand.vmem [shape: f32[32,1], index: 4, kind: input, shape index: {}]
  %s5 = inlined_call_operand.vmem [shape: f32[32,32], index: 5, kind: input, shape index: {}]
  %s6 = inlined_call_operand.vmem [shape: f32[32,1], index: 6, kind: input, shape index: {}]
  %s7 = inlined_call_operand.vmem [shape: f32[32,1], index: 7, kind: input, shape index: {}]
  %s8 = inlined_call_operand.<no memory space> [shape: f32[1,1], index: 8, kind: input, shape index: {}]
  %s9 = inlined_call_operand.hbm [shape: f32[1,8], index: 9, kind: output, shape index: {}]
  %s10 = sld [smem:[#allocation0]]
  $region46: #{value_network_forward.1} parent=0
    _
  %s12 = ssub.s32 1, %s10
  %s13 = scalar_select 0, %s12, %s10
  %v14 = vstv %s8
  %15 = vst [vmem:[#allocation2] sm:$0x1] %v14
  $region1: #{value_network_forward.1} parent=0
    #allocation3 [shape = 'u8[512]{0}', space=vmem, size = 0x400, scoped, tag = 'output window, operand 0, single buffered']
    #allocation4 [shape = 's32[1]{0}', space=sflag, size = 0x4, scoped, tag = 'scoped memory for value_network_forward.1']
    %16 = vsyncpa [#allocation4], 0
    // Predicated region
    $region2: #{value_network_forward.1} parent=1 // pred_check
      _
    $region3: #{value_network_forward.1} parent=1 // pred_check_branch
      %18 = sbr.rel (0) target = $region5
    $region4: #{value_network_forward.1} parent=1 // pred_region
      _
    $region5: #{value_network_forward.1} parent=1 // pred_fallthru
      _
    // Predicated region
    $region6: #{value_network_forward.1} parent=1 // pred_check
      _
    $region7: #{value_network_forward.1} parent=1 // pred_check_branch
      %20 = sbr.rel (0) target = $region9
    $region8: #{value_network_forward.1} parent=1 // pred_region
      _
    $region9: #{value_network_forward.1} parent=1 // pred_fallthru
      _
    // Predicated region
    $region10: #{value_network_forward.1} parent=1 // pred_check
      _
    $region11: #{value_network_forward.1} parent=1 // pred_check_branch
      %22 = sbr.rel (0) target = $region13
    $region12: #{value_network_forward.1} parent=1 // pred_region
      _
    $region13: #{value_network_forward.1} parent=1 // pred_fallthru
      _
    // Predicated region
    $region14: #{value_network_forward.1} parent=1 // pred_check
      _
    $region15: #{value_network_forward.1} parent=1 // pred_check_branch
      %24 = sbr.rel (0) target = $region17
    $region16: #{value_network_forward.1} parent=1 // pred_region
      _
    $region17: #{value_network_forward.1} parent=1 // pred_fallthru
      _
    // Predicated region
    $region18: #{value_network_forward.1} parent=1 // pred_check
      _
    $region19: #{value_network_forward.1} parent=1 // pred_check_branch
      %26 = sbr.rel (0) target = $region21
    $region20: #{value_network_forward.1} parent=1 // pred_region
      _
    $region21: #{value_network_forward.1} parent=1 // pred_fallthru
      _
    // Predicated region
    $region22: #{value_network_forward.1} parent=1 // pred_check
      _
    $region23: #{value_network_forward.1} parent=1 // pred_check_branch
      %28 = sbr.rel (0) target = $region25
    $region24: #{value_network_forward.1} parent=1 // pred_region
      _
    $region25: #{value_network_forward.1} parent=1 // pred_fallthru
      _
    // Predicated region
    $region26: #{value_network_forward.1} parent=1 // pred_check
      _
    $region27: #{value_network_forward.1} parent=1 // pred_check_branch
      %30 = sbr.rel (0) target = $region29
    $region28: #{value_network_forward.1} parent=1 // pred_region
      _
    $region29: #{value_network_forward.1} parent=1 // pred_fallthru
      _
    // Predicated region
    $region30: #{value_network_forward.1} parent=1 // pred_check
      _
    $region31: #{value_network_forward.1} parent=1 // pred_check_branch
      %32 = sbr.rel (0) target = $region33
    $region32: #{value_network_forward.1} parent=1 // pred_region
      _
    $region33: #{value_network_forward.1} parent=1 // pred_fallthru
      _
    // Predicated region
    $region34: #{value_network_forward.1} parent=1 // pred_check
      _
    $region35: #{value_network_forward.1} parent=1 // pred_check_branch
      %34 = sbr.rel (0) target = $region37
    $region36: #{value_network_forward.1} parent=1 // pred_region
      _
    $region37: #{value_network_forward.1} parent=1 // pred_fallthru
      _
    %v35 = vld [vmem:[%s0] sm:$0xff]
    %v36 = vld [vmem:[%s1] sm:$0xff]
    %v37 = vld [vmem:[%s1 + $0x8] sm:$0xff]
    %v38 = vld [vmem:[%s1 + $0x10] sm:$0xff]
    %v39 = vld [vmem:[%s1 + $0x18] sm:$0xff]
    %v40 = vld [vmem:[%s2] sm:$0xff]
    %v41 = vld [vmem:[%s2 + $0x8] sm:$0xff]
    %v42 = vld [vmem:[%s2 + $0x10] sm:$0xff]
    %v43 = vld [vmem:[%s2 + $0x18] sm:$0xff]
    %45 = vset.pattern.permute.xlu0 0
    %46 = vperm.xlu0 %45, %v40
    %v47 = vpop.permute.xlu0 %46
    %50 = vset.pattern.permute.xlu0 0
    %51 = vperm.xlu0 %50, %v41
    %v52 = vpop.permute.xlu0 %51
    %55 = vset.pattern.permute.xlu0 0
    %56 = vperm.xlu0 %55, %v42
    %v57 = vpop.permute.xlu0 %56
    %60 = vset.pattern.permute.xlu0 0
    %61 = vperm.xlu0 %60, %v43
    %v62 = vpop.permute.xlu0 %61
    %vm64 = vcmask 31744
    %v66 = vsel %vm64, %v36, 0
    %v69 = vsel %vm64, %v37, 0
    %v72 = vsel %vm64, %v38, 0
    %v75 = vsel %vm64, %v39, 0
    %v78 = vsel %vm64, %v35, 0
    %80 = vmatprep.subr.mxu0 0.0
    %81 = vmatpush1.xpose.msra.mxu0 %v78
    %82 = vmatprep.subr.mxu0 0.0
    %83 = vmatpush1.xpose.msra.mxu0 0.0
    %84 = vmatprep.subr.mxu0 0.0
    %85 = vmatpush1.xpose.msra.mxu0 0.0
    %86 = vmatprep.subr.mxu0 0.0
    %87 = vmatpush1.xpose.msra.mxu0 0.0
    %88 = vmatprep.subr.mxu0 0.0
    %89 = vmatpush1.xpose.msra.mxu0 0.0
    %90 = vmatprep.subr.mxu0 0.0
    %91 = vmatpush1.xpose.msra.mxu0 0.0
    %92 = vmatprep.subr.mxu0 0.0
    %93 = vmatpush1.xpose.msra.mxu0 0.0
    %94 = vmatprep.subr.mxu0 0.0
    %95 = vmatpush1.xpose.msra.mxu0 0.0
    %96 = vmatprep.subr.mxu0 0.0
    %97 = vmatpush1.xpose.msra.mxu0 0.0
    %98 = vmatprep.subr.mxu0 0.0
    %99 = vmatpush1.xpose.msra.mxu0 0.0
    %100 = vmatprep.subr.mxu0 0.0
    %101 = vmatpush1.xpose.msra.mxu0 0.0
    %102 = vmatprep.subr.mxu0 0.0
    %103 = vmatpush1.xpose.msra.mxu0 0.0
    %104 = vmatprep.subr.mxu0 0.0
    %105 = vmatpush1.xpose.msra.mxu0 0.0
    %106 = vmatprep.subr.mxu0 0.0
    %107 = vmatpush1.xpose.msra.mxu0 0.0
    %108 = vmatprep.subr.mxu0 0.0
    %109 = vmatpush1.xpose.msra.mxu0 0.0
    %110 = vmatprep.subr.mxu0 0.0
    %111 = vmatpush1.xpose.msra.mxu0 0.0
    %112 = vmatprep.subr.mxu0 0.0
    %113 = vmatpush1.xpose.msra.mxu0 0.0
    %114 = vmatprep.subr.mxu0 0.0
    %115 = vmatpush1.xpose.msra.mxu0 0.0
    %116 = vmatprep.subr.mxu0 0.0
    %117 = vmatpush1.xpose.msra.mxu0 0.0
    %118 = vmatprep.subr.mxu0 0.0
    %119 = vmatpush1.xpose.msra.mxu0 0.0
    %120 = vmatprep.subr.mxu0 0.0
    %121 = vmatpush1.xpose.msra.mxu0 0.0
    %122 = vmatprep.subr.mxu0 0.0
    %123 = vmatpush1.xpose.msra.mxu0 0.0
    %124 = vmatprep.subr.mxu0 0.0
    %125 = vmatpush1.xpose.msra.mxu0 0.0
    %126 = vmatprep.subr.mxu0 0.0
    %127 = vmatpush1.xpose.msra.mxu0 0.0
    %128 = vmatprep.subr.mxu0 0.0
    %129 = vmatpush1.xpose.msra.mxu0 0.0
    %130 = vmatprep.subr.mxu0 0.0
    %131 = vmatpush1.xpose.msra.mxu0 0.0
    %132 = vmatprep.subr.mxu0 0.0
    %133 = vmatpush1.xpose.msra.mxu0 0.0
    %134 = vmatprep.subr.mxu0 0.0
    %135 = vmatpush1.xpose.msra.mxu0 0.0
    %136 = vmatprep.subr.mxu0 0.0
    %137 = vmatpush1.xpose.msra.mxu0 0.0
    %138 = vmatprep.subr.mxu0 0.0
    %139 = vmatpush1.xpose.msra.mxu0 0.0
    %140 = vmatprep.subr.mxu0 0.0
    %141 = vmatpush1.xpose.msra.mxu0 0.0
    %142 = vmatprep.subr.mxu0 0.0
    %143 = vmatpush1.xpose.msra.mxu0 0.0
    %144 = vmatprep.mubr.f32.mxu0 0.0
    %145 = vmatmul.mubr.f32.gmra.mrb[0].mxu0 %v66
    %v146 = vpop.f32.mrb[0].mxu0
    %v147 = vadd.f32 %v47, %v146
    %v148 = vpop.f32.mrb[0].mxu0
    %149 = vmatprep.mubr.f32.mxu0 0.0
    %150 = vmatmul.mubr.f32.gmra.mrb[0].mxu0 %v69
    %v151 = vpop.f32.mrb[0].mxu0
    %v152 = vadd.f32 %v52, %v151
    %v153 = vpop.f32.mrb[0].mxu0
    %154 = vmatprep.mubr.f32.mxu0 0.0
    %155 = vmatmul.mubr.f32.gmra.mrb[0].mxu0 %v72
    %v156 = vpop.f32.mrb[0].mxu0
    %v157 = vadd.f32 %v57, %v156
    %v158 = vpop.f32.mrb[0].mxu0
    %159 = vmatprep.mubr.f32.mxu0 0.0
    %160 = vmatmul.mubr.f32.gmra.mrb[0].mxu0 %v75
    %v161 = vpop.f32.mrb[0].mxu0
    %v162 = vadd.f32 %v62, %v161
    %v163 = vpop.f32.mrb[0].mxu0
    %164 = vdwg.mxu0
    %v165 = vmax.f32 %v147, 0.0
    %v166 = vmax.f32 %v152, 0.0
    %v167 = vmax.f32 %v157, 0.0
    %v168 = vmax.f32 %v162, 0.0
    %v169 = vld [vmem:[%s3] sm:$0xff]
    %v170 = vld [vmem:[%s3 + $0x8] sm:$0xff]
    %v171 = vld [vmem:[%s3 + $0x10] sm:$0xff]
    %v172 = vld [vmem:[%s3 + $0x18] sm:$0xff]
    %v173 = vld [vmem:[%s4] sm:$0xff]
    %v174 = vld [vmem:[%s4 + $0x8] sm:$0xff]
    %v175 = vld [vmem:[%s4 + $0x10] sm:$0xff]
    %v176 = vld [vmem:[%s4 + $0x18] sm:$0xff]
    %178 = vset.pattern.permute.xlu0 0
    %179 = vperm.xlu0 %178, %v173
    %v180 = vpop.permute.xlu0 %179
    %183 = vset.pattern.permute.xlu0 0
    %184 = vperm.xlu0 %183, %v174
    %v185 = vpop.permute.xlu0 %184
    %188 = vset.pattern.permute.xlu0 0
    %189 = vperm.xlu0 %188, %v175
    %v190 = vpop.permute.xlu0 %189
    %193 = vset.pattern.permute.xlu0 0
    %194 = vperm.xlu0 %193, %v176
    %v195 = vpop.permute.xlu0 %194
    %vm197 = vcmask 261120
    %v199 = vsel %vm197, %v169, 0
    %v202 = vsel %vm197, %v170, 0
    %v205 = vsel %vm197, %v171, 0
    %v208 = vsel %vm197, %v172, 0
    %210 = vmatprep.subr.mxu0 0.0
    %211 = vmatpush1.msra.mxu0 %v165
    %212 = vmatprep.subr.mxu0 0.0
    %213 = vmatpush1.msra.mxu0 %v166
    %214 = vmatprep.subr.mxu0 0.0
    %215 = vmatpush1.msra.mxu0 %v167
    %216 = vmatprep.subr.mxu0 0.0
    %217 = vmatpush1.msra.mxu0 %v168
    %218 = vmatprep.subr.mxu0 0.0
    %219 = vmatpush1.msra.mxu0 0.0
    %220 = vmatprep.subr.mxu0 0.0
    %221 = vmatpush1.msra.mxu0 0.0
    %222 = vmatprep.subr.mxu0 0.0
    %223 = vmatpush1.msra.mxu0 0.0
    %224 = vmatprep.subr.mxu0 0.0
    %225 = vmatpush1.msra.mxu0 0.0
    %226 = vmatprep.subr.mxu0 0.0
    %227 = vmatpush1.msra.mxu0 0.0
    %228 = vmatprep.subr.mxu0 0.0
    %229 = vmatpush1.msra.mxu0 0.0
    %230 = vmatprep.subr.mxu0 0.0
    %231 = vmatpush1.msra.mxu0 0.0
    %232 = vmatprep.subr.mxu0 0.0
    %233 = vmatpush1.msra.mxu0 0.0
    %234 = vmatprep.subr.mxu0 0.0
    %235 = vmatpush1.msra.mxu0 0.0
    %236 = vmatprep.subr.mxu0 0.0
    %237 = vmatpush1.msra.mxu0 0.0
    %238 = vmatprep.subr.mxu0 0.0
    %239 = vmatpush1.msra.mxu0 0.0
    %240 = vmatprep.subr.mxu0 0.0
    %241 = vmatpush1.msra.mxu0 0.0
    %242 = vmatprep.subr.mxu0 0.0
    %243 = vmatpush1.msra.mxu0 0.0
    %244 = vmatprep.subr.mxu0 0.0
    %245 = vmatpush1.msra.mxu0 0.0
    %246 = vmatprep.subr.mxu0 0.0
    %247 = vmatpush1.msra.mxu0 0.0
    %248 = vmatprep.subr.mxu0 0.0
    %249 = vmatpush1.msra.mxu0 0.0
    %250 = vmatprep.subr.mxu0 0.0
    %251 = vmatpush1.msra.mxu0 0.0
    %252 = vmatprep.subr.mxu0 0.0
    %253 = vmatpush1.msra.mxu0 0.0
    %254 = vmatprep.subr.mxu0 0.0
    %255 = vmatpush1.msra.mxu0 0.0
    %256 = vmatprep.subr.mxu0 0.0
    %257 = vmatpush1.msra.mxu0 0.0
    %258 = vmatprep.subr.mxu0 0.0
    %259 = vmatpush1.msra.mxu0 0.0
    %260 = vmatprep.subr.mxu0 0.0
    %261 = vmatpush1.msra.mxu0 0.0
    %262 = vmatprep.subr.mxu0 0.0
    %263 = vmatpush1.msra.mxu0 0.0
    %264 = vmatprep.subr.mxu0 0.0
    %265 = vmatpush1.msra.mxu0 0.0
    %266 = vmatprep.subr.mxu0 0.0
    %267 = vmatpush1.msra.mxu0 0.0
    %268 = vmatprep.subr.mxu0 0.0
    %269 = vmatpush1.msra.mxu0 0.0
    %270 = vmatprep.subr.mxu0 0.0
    %271 = vmatpush1.msra.mxu0 0.0
    %272 = vmatprep.subr.mxu0 0.0
    %273 = vmatpush1.msra.mxu0 0.0
    %274 = vmatprep.mubr.f32.mxu0 0.0
    %275 = vmatmul.mubr.f32.gmra.mrb[0].mxu0 %v199
    %v276 = vpop.f32.mrb[0].mxu0
    %v277 = vadd.f32 %v180, %v276
    %v278 = vpop.f32.mrb[0].mxu0
    %279 = vmatprep.mubr.f32.mxu0 0.0
    %280 = vmatmul.mubr.f32.gmra.mrb[0].mxu0 %v202
    %v281 = vpop.f32.mrb[0].mxu0
    %v282 = vadd.f32 %v185, %v281
    %v283 = vpop.f32.mrb[0].mxu0
    %284 = vmatprep.mubr.f32.mxu0 0.0
    %285 = vmatmul.mubr.f32.gmra.mrb[0].mxu0 %v205
    %v286 = vpop.f32.mrb[0].mxu0
    %v287 = vadd.f32 %v190, %v286
    %v288 = vpop.f32.mrb[0].mxu0
    %289 = vmatprep.mubr.f32.mxu0 0.0
    %290 = vmatmul.mubr.f32.gmra.mrb[0].mxu0 %v208
    %v291 = vpop.f32.mrb[0].mxu0
    %v292 = vadd.f32 %v195, %v291
    %v293 = vpop.f32.mrb[0].mxu0
    %294 = vdwg.mxu0
    %v295 = vmax.f32 %v277, 0.0
    %v296 = vmax.f32 %v282, 0.0
    %v297 = vmax.f32 %v287, 0.0
    %v298 = vmax.f32 %v292, 0.0
    %v299 = vld [vmem:[%s5] sm:$0xff]
    %v300 = vld [vmem:[%s5 + $0x8] sm:$0xff]
    %v301 = vld [vmem:[%s5 + $0x10] sm:$0xff]
    %v302 = vld [vmem:[%s5 + $0x18] sm:$0xff]
    %v303 = vld [vmem:[%s6] sm:$0xff]
    %v304 = vld [vmem:[%s6 + $0x8] sm:$0xff]
    %v305 = vld [vmem:[%s6 + $0x10] sm:$0xff]
    %v306 = vld [vmem:[%s6 + $0x18] sm:$0xff]
    %308 = vset.pattern.permute.xlu0 0
    %309 = vperm.xlu0 %308, %v303
    %v310 = vpop.permute.xlu0 %309
    %313 = vset.pattern.permute.xlu0 0
    %314 = vperm.xlu0 %313, %v304
    %v315 = vpop.permute.xlu0 %314
    %318 = vset.pattern.permute.xlu0 0
    %319 = vperm.xlu0 %318, %v305
    %v320 = vpop.permute.xlu0 %319
    %323 = vset.pattern.permute.xlu0 0
    %324 = vperm.xlu0 %323, %v306
    %v325 = vpop.permute.xlu0 %324
    %v328 = vsel %vm197, %v299, 0
    %v331 = vsel %vm197, %v300, 0
    %v334 = vsel %vm197, %v301, 0
    %v337 = vsel %vm197, %v302, 0
    %339 = vmatprep.subr.mxu0 0.0
    %340 = vmatpush1.msra.mxu0 %v295
    %341 = vmatprep.subr.mxu0 0.0
    %342 = vmatpush1.msra.mxu0 %v296
    %343 = vmatprep.subr.mxu0 0.0
    %344 = vmatpush1.msra.mxu0 %v297
    %345 = vmatprep.subr.mxu0 0.0
    %346 = vmatpush1.msra.mxu0 %v298
    %347 = vmatprep.subr.mxu0 0.0
    %348 = vmatpush1.msra.mxu0 0.0
    %349 = vmatprep.subr.mxu0 0.0
    %350 = vmatpush1.msra.mxu0 0.0
    %351 = vmatprep.subr.mxu0 0.0
    %352 = vmatpush1.msra.mxu0 0.0
    %353 = vmatprep.subr.mxu0 0.0
    %354 = vmatpush1.msra.mxu0 0.0
    %355 = vmatprep.subr.mxu0 0.0
    %356 = vmatpush1.msra.mxu0 0.0
    %357 = vmatprep.subr.mxu0 0.0
    %358 = vmatpush1.msra.mxu0 0.0
    %359 = vmatprep.subr.mxu0 0.0
    %360 = vmatpush1.msra.mxu0 0.0
    %361 = vmatprep.subr.mxu0 0.0
    %362 = vmatpush1.msra.mxu0 0.0
    %363 = vmatprep.subr.mxu0 0.0
    %364 = vmatpush1.msra.mxu0 0.0
    %365 = vmatprep.subr.mxu0 0.0
    %366 = vmatpush1.msra.mxu0 0.0
    %367 = vmatprep.subr.mxu0 0.0
    %368 = vmatpush1.msra.mxu0 0.0
    %369 = vmatprep.subr.mxu0 0.0
    %370 = vmatpush1.msra.mxu0 0.0
    %371 = vmatprep.subr.mxu0 0.0
    %372 = vmatpush1.msra.mxu0 0.0
    %373 = vmatprep.subr.mxu0 0.0
    %374 = vmatpush1.msra.mxu0 0.0
    %375 = vmatprep.subr.mxu0 0.0
    %376 = vmatpush1.msra.mxu0 0.0
    %377 = vmatprep.subr.mxu0 0.0
    %378 = vmatpush1.msra.mxu0 0.0
    %379 = vmatprep.subr.mxu0 0.0
    %380 = vmatpush1.msra.mxu0 0.0
    %381 = vmatprep.subr.mxu0 0.0
    %382 = vmatpush1.msra.mxu0 0.0
    %383 = vmatprep.subr.mxu0 0.0
    %384 = vmatpush1.msra.mxu0 0.0
    %385 = vmatprep.subr.mxu0 0.0
    %386 = vmatpush1.msra.mxu0 0.0
    %387 = vmatprep.subr.mxu0 0.0
    %388 = vmatpush1.msra.mxu0 0.0
    %389 = vmatprep.subr.mxu0 0.0
    %390 = vmatpush1.msra.mxu0 0.0
    %391 = vmatprep.subr.mxu0 0.0
    %392 = vmatpush1.msra.mxu0 0.0
    %393 = vmatprep.subr.mxu0 0.0
    %394 = vmatpush1.msra.mxu0 0.0
    %395 = vmatprep.subr.mxu0 0.0
    %396 = vmatpush1.msra.mxu0 0.0
    %397 = vmatprep.subr.mxu0 0.0
    %398 = vmatpush1.msra.mxu0 0.0
    %399 = vmatprep.subr.mxu0 0.0
    %400 = vmatpush1.msra.mxu0 0.0
    %401 = vmatprep.subr.mxu0 0.0
    %402 = vmatpush1.msra.mxu0 0.0
    %403 = vmatprep.mubr.f32.mxu0 0.0
    %404 = vmatmul.mubr.f32.gmra.mrb[0].mxu0 %v328
    %v405 = vpop.f32.mrb[0].mxu0
    %v406 = vadd.f32 %v310, %v405
    %v407 = vpop.f32.mrb[0].mxu0
    %408 = vmatprep.mubr.f32.mxu0 0.0
    %409 = vmatmul.mubr.f32.gmra.mrb[0].mxu0 %v331
    %v410 = vpop.f32.mrb[0].mxu0
    %v411 = vadd.f32 %v315, %v410
    %v412 = vpop.f32.mrb[0].mxu0
    %413 = vmatprep.mubr.f32.mxu0 0.0
    %414 = vmatmul.mubr.f32.gmra.mrb[0].mxu0 %v334
    %v415 = vpop.f32.mrb[0].mxu0
    %v416 = vadd.f32 %v320, %v415
    %v417 = vpop.f32.mrb[0].mxu0
    %418 = vmatprep.mubr.f32.mxu0 0.0
    %419 = vmatmul.mubr.f32.gmra.mrb[0].mxu0 %v337
    %v420 = vpop.f32.mrb[0].mxu0
    %v421 = vadd.f32 %v325, %v420
    %v422 = vpop.f32.mrb[0].mxu0
    %423 = vdwg.mxu0
    %v424 = vmax.f32 %v406, 0.0
    %v425 = vmax.f32 %v411, 0.0
    %v426 = vmax.f32 %v416, 0.0
    %v427 = vmax.f32 %v421, 0.0
    %v428 = vld [vmem:[%s7] sm:$0xff]
    %v429 = vld [vmem:[%s7 + $0x8] sm:$0xff]
    %v430 = vld [vmem:[%s7 + $0x10] sm:$0xff]
    %v431 = vld [vmem:[%s7 + $0x18] sm:$0xff]
    %433 = vset.pattern.permute.xlu0 0
    %434 = vperm.xlu0 %433, %v428
    %v435 = vpop.permute.xlu0 %434
    %438 = vset.pattern.permute.xlu0 0
    %439 = vperm.xlu0 %438, %v429
    %v440 = vpop.permute.xlu0 %439
    %443 = vset.pattern.permute.xlu0 0
    %444 = vperm.xlu0 %443, %v430
    %v445 = vpop.permute.xlu0 %444
    %448 = vset.pattern.permute.xlu0 0
    %449 = vperm.xlu0 %448, %v431
    %v450 = vpop.permute.xlu0 %449
    %v452 = vmul.f32 %v435, %v424
    %v453 = vmul.f32 %v440, %v425
    %v454 = vmul.f32 %v445, %v426
    %v455 = vmul.f32 %v450, %v427
    %vm456 = vcmask 64512
    %v457 = vsel %vm456, %v452, 0.0
    %v458 = vsel %vm456, %v453, 0.0
    %v459 = vadd.f32 %v457, %v458
    %v460 = vsel %vm456, %v454, 0.0
    %v461 = vadd.f32 %v459, %v460
    %v462 = vsel %vm456, %v455, 0.0
    %v463 = vadd.f32 %v461, %v462
    %v464 = vrot.slane %v463, 4
    %v465 = vadd.f32 %v463, %v464
    %v466 = vrot.slane %v465, 2
    %v467 = vadd.f32 %v465, %v466
    %v468 = vrot.slane %v467, 1
    %v469 = vadd.f32 %v467, %v468
    %v470 = vld [vmem:[#allocation2] sm:$0x1]
    %472 = vset.pattern.permute.xlu0 0
    %473 = vperm.xlu0 %472, %v470
    %v474 = vpop.permute.xlu0 %473
    %v476 = vlaneseq
    %v477 = vshrl.u32 %v476, 7
    %v478 = vsub.s32 0, %v477
    %v479 = vrot.slane %v474, %v478
    %v480 = vadd.f32 %v469, %v479
    %vm481 = vcmask 57344
    %482 = vst.msk [vmem:[#allocation3] sm:$0x1] %vm481, %v480
    // Predicated region
    $region38: #{value_network_forward.1} parent=1 // pred_check
      _
    $region39: #{value_network_forward.1} parent=1 // pred_check_branch
      %484 = sbr.rel (0) target = $region41
    $region40: #{value_network_forward.1} parent=1 // pred_region
      %s486 = ssub.s32 16, 16
      %487 = vsyncadd [#allocation4], %s486
      %s489 = sshll.u32 [#allocation3], 4
      %s490 = int_to_ptr.vmem [resolvable:$true] %s489
      %492 = dma.vmem_to_hbm [thread:$0]  %s490, 16, %s9, [#allocation4]
    $region41: #{value_network_forward.1} parent=1 // pred_fallthru
      _
    // Predicated region
    $region42: #{value_network_forward.1} parent=1 // pred_check
      _
    $region43: #{value_network_forward.1} parent=1 // pred_check_branch
      %494 = sbr.rel (0) target = $region45
    $region44: #{value_network_forward.1} parent=1 // pred_region
      %495 = dma.done [#allocation4], 16
    $region45: #{value_network_forward.1} parent=1 // pred_fallthru
      _
    %496 = vsyncpa [#allocation4], 1

</llo_original>
